<compile_context>
chip_gen: v6e
topology: v6e:2x2x1
jax: 0.10.0
libtpu: 0.0.40
codegen_flags: <defaults>
</compile_context>

<pallas_src>
import functools

import jax
import jax.numpy as jnp
from jax.experimental import pallas as pl
from jax.experimental.pallas import tpu as pltpu


def _round_up(x, m):
    return ((x + m - 1) // m) * m


def _linear_kernel(x_ref, w_ref, b_ref, o_ref):
    # x_ref: (tm, K)  bf16 row tile of flattened activations
    # w_ref: (K, tn)  bf16 class tile of the pre-transposed weight
    # b_ref: (1, tn)  f32 class tile of the bias
    # o_ref: (tm, tn) output tile
    acc = jnp.dot(x_ref[...], w_ref[...], preferred_element_type=jnp.float32)
    acc = acc + b_ref[...]           # broadcast (1, tn) over rows, f32
    o_ref[...] = acc.astype(o_ref.dtype)


def _vmem_capacity_bytes():
    try:
        return int(pltpu.get_tpu_info().vmem_capacity_bytes)
    except Exception:
        return 64 * 1024 * 1024      # conservative default (v7x per-TC VMEM)


@functools.partial(jax.jit, static_argnames=("tm", "tn"))
def classifier_forward(x, weight, bias, *, tm=1024, tn=512):
    """x: (B, S, in_dim); weight: (num_classes, in_dim); bias: (num_classes,)."""
    B, S, K = x.shape
    C = weight.shape[0]
    M = B * S
    out_dtype = x.dtype
    out_itemsize = jnp.dtype(out_dtype).itemsize

    # --- class tiling: lane-dense (multiple of 128), tn_eff divides C_pad ---
    C_pad = _round_up(C, 128)
    tn_eff = max(128, (min(tn, C_pad) // 128) * 128)
    while C_pad % tn_eff != 0:
        tn_eff -= 128

    # --- row tiling: biggest tile that fits the per-generation VMEM budget --
    vmem_cap = _vmem_capacity_bytes()
    budget = int(0.60 * vmem_cap)    # leave headroom for compiler scratch

    def tile_bytes(tm_c):
        # double-buffered x / w / bias tiles (bf16, bf16, f32) + out tile (f32-ish)
        return 2 * (tm_c * K * 2 + K * tn_eff * 2 + tn_eff * 4
                    + tm_c * tn_eff * out_itemsize)

    tm_eff = max(8, _round_up(min(tm, _round_up(M, 8)), 8))
    while tm_eff > 8 and tile_bytes(tm_eff) > budget:
        tm_eff = max(8, _round_up(tm_eff // 2, 8))
    # TODO(synk): if even tm_eff=8 overflows the budget (enormous in_dim), add
    # an innermost "arbitrary" K grid axis with a VMEM f32 accumulator scratch.

    grid = (pl.cdiv(M, tm_eff), C_pad // tn_eff)

    # --- input prep: bf16 MXU inputs, one-time weight transpose / pad --------
    x2d = x.reshape(M, K).astype(jnp.bfloat16)
    w_p = weight.T.astype(jnp.bfloat16)          # (K, C) — one-time relayout
    b_p = bias.astype(jnp.float32)
    if C_pad != C:
        w_p = jnp.pad(w_p, ((0, 0), (0, C_pad - C)))
        b_p = jnp.pad(b_p, ((0, C_pad - C),))
    b2d = b_p.reshape(1, C_pad)

    vmem_limit = min(int(0.85 * vmem_cap),
                     max(32 * 1024 * 1024, tile_bytes(tm_eff) + 4 * 1024 * 1024))

    n_row_blocks = grid[0]
    cost = pl.CostEstimate(
        flops=2 * M * K * C_pad,
        transcendentals=0,
        bytes_accessed=(
            M * K * 2                                # x stream (bf16), read once
            + n_row_blocks * C_pad * K * 2           # weight re-streamed per row block
            + n_row_blocks * grid[1] * tn_eff * 4    # bias tiles
            + M * C * out_itemsize                   # output stream
        ),
    )

    out2d = pl.pallas_call(
        _linear_kernel,
        out_shape=jax.ShapeDtypeStruct((M, C), out_dtype),
        grid_spec=pltpu.PrefetchScalarGridSpec(
            num_scalar_prefetch=0,
            grid=grid,
            in_specs=[
                # row tile of flattened activations: varies with i only
                pl.BlockSpec((tm_eff, K), lambda i, j: (i, 0)),
                # class tile of the pre-transposed weight: varies with j only
                pl.BlockSpec((K, tn_eff), lambda i, j: (0, j)),
                # class tile of the bias: varies with j only (tiny DMA)
                pl.BlockSpec((1, tn_eff), lambda i, j: (0, j)),
            ],
            out_specs=pl.BlockSpec((tm_eff, tn_eff), lambda i, j: (i, j)),
        ),
        compiler_params=pltpu.CompilerParams(
            dimension_semantics=("parallel", "parallel"),
            vmem_limit_bytes=int(vmem_limit),
        ),
        cost_estimate=cost,
    )(x2d, w_p, b2d)

    return out2d.reshape(B, S, C)


if __name__ == "__main__":
    # Small shapes consistent with the module: x: (B, S, in_dim)
    B, S, in_dim, num_classes = 2, 8, 32, 10

    key = jax.random.PRNGKey(0)
    kx, kw, kb = jax.random.split(key, 3)

    x = jax.random.uniform(kx, (B, S, in_dim), dtype=jnp.float32)
    # Deterministic "nn.Linear"-style init (uniform in +/- 1/sqrt(in_dim))
    bound = 1.0 / jnp.sqrt(jnp.float32(in_dim))
    weight = jax.random.uniform(
        kw, (num_classes, in_dim), minval=-bound, maxval=bound, dtype=jnp.float32
    )
    bias = jax.random.uniform(
        kb, (num_classes,), minval=-bound, maxval=bound, dtype=jnp.float32
    )

    out = classifier_forward(x, weight, bias)
    jax.block_until_ready(out)
    assert out.shape == (B, S, num_classes)

    # Strict check against a bf16-input / f32-accumulation reference
    ref_bf16 = jnp.einsum(
        "bsd,cd->bsc",
        x.astype(jnp.bfloat16),
        weight.astype(jnp.bfloat16),
        preferred_element_type=jnp.float32,
    ) + bias
    assert jnp.allclose(out, ref_bf16, atol=1e-4, rtol=1e-4)

    # Loose check against the exact f32 reference (bf16 quantization error only)
    ref_f32 = jnp.einsum("bsd,cd->bsc", x, weight) + bias
    assert jnp.allclose(out, ref_f32, atol=3e-2, rtol=3e-2)

    print("KERNEL_OK")
</pallas_src>

<mosaic_0001>
module attributes {stable_mosaic.version = 11 : i64} {
  func.func @_linear_kernel(%arg0: i32, %arg1: i32, %arg2: memref<16x32xbf16, #tpu.memory_space<vmem>>, %arg3: memref<32x128xbf16, #tpu.memory_space<vmem>>, %arg4: memref<1x128xf32, #tpu.memory_space<vmem>>, %arg5: memref<16x128xf32, #tpu.memory_space<vmem>>) attributes {dimension_semantics = [#tpu.dimension_semantics<parallel>, #tpu.dimension_semantics<parallel>], iteration_bounds = array<i64: 1, 1>, scalar_prefetch = 0 : i64, scratch_operands = 0 : i64, tpu.core_type = #tpu.core_type<tc>, window_params = [{transform_indices = @transform_0, window_bounds = array<i64: 16, 32>}, {transform_indices = @transform_1, window_bounds = array<i64: 32, 128>}, {transform_indices = @transform_2, window_bounds = array<i64: 1, 128>}, {transform_indices = @transform_3, window_bounds = array<i64: 16, 128>}]} {
    %c0 = arith.constant 0 : index
    %c0_0 = arith.constant 0 : index
    %0 = vector.load %arg2[%c0, %c0_0] : memref<16x32xbf16, #tpu.memory_space<vmem>>, vector<16x32xbf16>
    %c0_1 = arith.constant 0 : index
    %c0_2 = arith.constant 0 : index
    %1 = vector.load %arg3[%c0_1, %c0_2] : memref<32x128xbf16, #tpu.memory_space<vmem>>, vector<32x128xbf16>
    %cst = arith.constant dense<0.000000e+00> : vector<16x128xf32>
    %2 = tpu.matmul %0, %1, %cst {dimension_numbers = #tpu.dot_dimension_numbers<[1], [0], [0], [1], [0, 0, 1, 1], [], []>} : vector<16x32xbf16>, vector<32x128xbf16>, vector<16x128xf32> -> vector<16x128xf32>
    %c0_3 = arith.constant 0 : index
    %c0_4 = arith.constant 0 : index
    %3 = vector.load %arg4[%c0_3, %c0_4] : memref<1x128xf32, #tpu.memory_space<vmem>>, vector<1x128xf32>
    %4 = vector.broadcast %3 : vector<1x128xf32> to vector<16x128xf32>
    %5 = arith.addf %2, %4 : vector<16x128xf32>
    %c0_5 = arith.constant 0 : index
    %c0_6 = arith.constant 0 : index
    %6 = vector.load %arg5[%c0_5, %c0_6] : memref<16x128xf32, #tpu.memory_space<vmem>>, vector<16x128xf32>
    tpu.vector_store %arg5[%c0_5, %c0_6], %5 {strides = array<i32>} : memref<16x128xf32, #tpu.memory_space<vmem>>, vector<16x128xf32>,
    return
  }
  func.func @transform_0(%arg0: i32, %arg1: i32) -> (i32, i32) {
    %c0_i32 = arith.constant 0 : i32
    %c0_i32_0 = arith.constant 0 : i32
    return %arg0, %c0_i32 : i32, i32
  }
  func.func @transform_1(%arg0: i32, %arg1: i32) -> (i32, i32) {
    %c0_i32 = arith.constant 0 : i32
    %c0_i32_0 = arith.constant 0 : i32
    return %c0_i32, %arg1 : i32, i32
  }
  func.func @transform_2(%arg0: i32, %arg1: i32) -> (i32, i32) {
    %c0_i32 = arith.constant 0 : i32
    %c0_i32_0 = arith.constant 0 : i32
    return %c0_i32, %arg1 : i32, i32
  }
  func.func @transform_3(%arg0: i32, %arg1: i32) -> (i32, i32) {
    %c0_i32 = arith.constant 0 : i32
    return %arg0, %arg1 : i32, i32
  }
}

</mosaic_0001>

<llo_original>
// kernel: classifier_forward.1
$region0: #{classifier_forward.1}
  #allocation0 [shape = 'u32[]', space=smem, size = 0x4, offset = 0x4, fixed_abs, tag = 'smem constant byte address 0x4 - core index']
  #allocation1 [shape = 'u32[144,128]{1,0:T(1,128)}', space=vmem, size = 0x12000, scoped, tag = 'internal scratch']
  %s0 = inlined_call_operand.vmem [shape: bf16[16,32], index: 0, kind: input, shape index: {}]
  %s1 = inlined_call_operand.vmem [shape: bf16[32,128], index: 1, kind: input, shape index: {}]
  %s2 = inlined_call_operand.vmem [shape: f32[1,128], index: 2, kind: input, shape index: {}]
  %s3 = inlined_call_operand.hbm [shape: f32[16,10], index: 3, kind: output, shape index: {}]
  %s4 = sld [smem:[#allocation0]]
  $region22: #{classifier_forward.1} parent=0
    _
  %s6 = ssub.s32 1, %s4
  %s7 = scalar_select 0, %s6, %s4
  $region1: #{classifier_forward.1} parent=0
    #allocation2 [shape = 'u8[8192]{0}', space=vmem, size = 0x2000, scoped, tag = 'output window, operand 0, single buffered']
    #allocation3 [shape = 's32[1]{0}', space=sflag, size = 0x4, scoped, tag = 'scoped memory for classifier_forward.1']
    %8 = vsyncpa [#allocation3], 0
    // Predicated region
    $region2: #{classifier_forward.1} parent=1 // pred_check
      _
    $region3: #{classifier_forward.1} parent=1 // pred_check_branch
      %10 = sbr.rel (0) target = $region5
    $region4: #{classifier_forward.1} parent=1 // pred_region
      _
    $region5: #{classifier_forward.1} parent=1 // pred_fallthru
      _
    // Predicated region
    $region6: #{classifier_forward.1} parent=1 // pred_check
      _
    $region7: #{classifier_forward.1} parent=1 // pred_check_branch
      %12 = sbr.rel (0) target = $region9
    $region8: #{classifier_forward.1} parent=1 // pred_region
      _
    $region9: #{classifier_forward.1} parent=1 // pred_fallthru
      _
    // Predicated region
    $region10: #{classifier_forward.1} parent=1 // pred_check
      _
    $region11: #{classifier_forward.1} parent=1 // pred_check_branch
      %14 = sbr.rel (0) target = $region13
    $region12: #{classifier_forward.1} parent=1 // pred_region
      _
    $region13: #{classifier_forward.1} parent=1 // pred_fallthru
      _
    %v16 = vld [vmem:[%s0] sm:$0xf]
    %v17 = vld [vmem:[%s0 + $0x4] sm:$0xf]
    %v18 = vld [vmem:[%s1] sm:$0xf]
    %v19 = vld [vmem:[%s1 + $0x4] sm:$0xf]
    %v20 = vld [vmem:[%s1 + $0x8] sm:$0xf]
    %v21 = vld [vmem:[%s1 + $0xc] sm:$0xf]
    %v22 = vld [vmem:[%s2] sm:$0x1]
    %v24 = vlaneseq
    %v25 = vshrl.u32 %v24, 7
    %v26 = vsub.s32 0, %v25
    %v27 = vrot.slane %v22, %v26
    %v31 = vunpack.c.l.b16 %v16
    %v32 = vunpack.c.l.b16 %v17
    %v33 = vpack.c.b16 %v32, %v31
    %v38 = vunpack.c.l.b16 %v18
    %v39 = vunpack.c.l.b16 %v19
    %v40 = vunpack.c.l.b16 %v20
    %v41 = vunpack.c.l.b16 %v21
    %v42 = vpack.c.b16 %v39, %v38
    %v43 = vpack.c.b16 %v41, %v40
    %vm46 = vcmask 261120
    %v48 = vsel %vm46, %v33, 0
    %50 = vmatprep.subr.bf16.mxu0 0
    %51 = vmatpush1.bf16.msra.mxu0 0
    %52 = vmatprep.subr.bf16.mxu0 0
    %53 = vmatpush1.bf16.msra.mxu0 0
    %54 = vmatprep.subr.bf16.mxu0 0
    %55 = vmatpush1.bf16.msra.mxu0 0
    %56 = vmatprep.subr.bf16.mxu0 0
    %57 = vmatpush1.bf16.msra.mxu0 0
    %58 = vmatprep.subr.bf16.mxu0 0
    %59 = vmatpush1.bf16.msra.mxu0 0
    %60 = vmatprep.subr.bf16.mxu0 0
    %61 = vmatpush1.bf16.msra.mxu0 0
    %62 = vmatprep.subr.bf16.mxu0 0
    %63 = vmatpush1.bf16.msra.mxu0 %v43
    %64 = vmatprep.subr.bf16.mxu0 0
    %65 = vmatpush1.bf16.msra.mxu0 %v42
    %66 = vmatprep.subr.bf16.mxu0 0
    %67 = vmatpush2.bf16.msra.mxu0 0
    %68 = vmatprep.subr.bf16.mxu0 0
    %69 = vmatpush2.bf16.msra.mxu0 0
    %70 = vmatprep.subr.bf16.mxu0 0
    %71 = vmatpush2.bf16.msra.mxu0 0
    %72 = vmatprep.subr.bf16.mxu0 0
    %73 = vmatpush2.bf16.msra.mxu0 0
    %74 = vmatprep.subr.bf16.mxu0 0
    %75 = vmatpush2.bf16.msra.mxu0 0
    %76 = vmatprep.subr.bf16.mxu0 0
    %77 = vmatpush2.bf16.msra.mxu0 0
    %78 = vmatprep.subr.bf16.mxu0 0
    %79 = vmatpush2.bf16.msra.mxu0 0
    %80 = vmatprep.subr.bf16.mxu0 0
    %81 = vmatpush2.bf16.msra.mxu0 0
    %82 = vmatprep.mubr.bf16.mxu0 0
    %83 = vmatmul.mubr.bf16.gmra.mxu0 %v48
    %v84 = vpop.f32.mrf.mxu0
    %v85 = vadd.f32 %v27, %v84
    %v86 = vpop.f32.mrf.mxu0
    %v87 = vpop.f32.mrf.mxu0
    %v88 = vadd.f32 %v27, %v87
    %v89 = vpop.f32.mrf.mxu0
    %90 = vdwg.mxu0
    %91 = vst [vmem:[#allocation2] sm:$0xff] %v85
    %92 = vst [vmem:[#allocation2 + $0x8] sm:$0xff] %v88
    // Predicated region
    $region14: #{classifier_forward.1} parent=1 // pred_check
      _
    $region15: #{classifier_forward.1} parent=1 // pred_check_branch
      %94 = sbr.rel (0) target = $region17
    $region16: #{classifier_forward.1} parent=1 // pred_region
      %s96 = ssub.s32 256, 256
      %97 = vsyncadd [#allocation3], %s96
      %s98 = sshll.u32 [#allocation2], 4
      %s99 = int_to_ptr.vmem [resolvable:$true] %s98
      %104 = dma.vmem_to_hbm [thread:$0]  %s99, 256, %s3, [#allocation3], 128, 128, 8
    $region17: #{classifier_forward.1} parent=1 // pred_fallthru
      _
    // Predicated region
    $region18: #{classifier_forward.1} parent=1 // pred_check
      _
    $region19: #{classifier_forward.1} parent=1 // pred_check_branch
      %106 = sbr.rel (0) target = $region21
    $region20: #{classifier_forward.1} parent=1 // pred_region
      %107 = dma.done [#allocation3], 256
    $region21: #{classifier_forward.1} parent=1 // pred_fallthru
      _
    %108 = vsyncpa [#allocation3], 1

</llo_original>
